<compile_context>
chip_gen: v6e
topology: v6e:2x2x1
jax: 0.10.0
libtpu: 0.0.40
codegen_flags: <defaults>
</compile_context>

<pallas_src>
import jax
import jax.numpy as jnp
from jax.experimental import pallas as pl
from jax.experimental.pallas import tpu as pltpu


def _down_kernel(alpha_ref, xp_ref, w_ref, b_ref, o_ref):
    # xp_ref block: (1, 4, C, TM)   -- 4 = the 2x2 pooling window elements
    # w_ref  block: (2C, C)
    # b_ref  block: (2C, 1)
    # o_ref  block: (1, 2C, TM)
    x0 = xp_ref[0, 0]                              # (C, TM)
    x1 = xp_ref[0, 1]
    x2 = xp_ref[0, 2]
    x3 = xp_ref[0, 3]
    # MaxPool2d(2): elementwise max over the 4 window positions (VPU).
    p = jnp.maximum(jnp.maximum(x0, x1), jnp.maximum(x2, x3))           # (C, TM)
    # 1x1 conv == channels-major matmul on the MXU, plus bias.
    y = jnp.dot(w_ref[...], p, preferred_element_type=jnp.float32)      # (2C, TM)
    y = y + b_ref[...]                                                   # (2C,1) bcast
    # PReLU with a single shared parameter alpha (PyTorch nn.PReLU() default).
    alpha = alpha_ref[0]
    o_ref[0] = jnp.where(y >= 0, y, alpha * y).astype(o_ref.dtype)


def _pick_tm(M, target=2048):
    """Spatial tile size: lane-dense (multiple of 128) medium tiles when M is
    large; the whole axis when it is small (block == full dim is always legal)."""
    if M <= target:
        return M
    if M % 128 == 0:
        return target            # partial last block handled by masked writes
    return M                     # fallback: un-tiled (still correct)


def down_forward(x_nchw, weight, bias, prelu_alpha):
    """x_nchw: (N, C, H, W) f32.  weight: (2C, C) f32 (squeezed 1x1 conv kernel).
    bias: (2C,) f32.  prelu_alpha: () f32.  Returns (N, 2C, H//2, W//2) f32."""
    N, C, H, W = x_nchw.shape
    assert H % 2 == 0 and W % 2 == 0
    Ho, Wo = H // 2, W // 2
    M = Ho * Wo
    C2 = 2 * C
    TM = _pick_tm(M)
    num_m_tiles = pl.cdiv(M, TM)

    # ---- glue (layout only, ONE materialized transpose):
    # NCHW -> (N, 4, C, Ho*Wo) channels-major pooling-window layout.
    xp = x_nchw.reshape(N, C, Ho, 2, Wo, 2)
    xp = jnp.transpose(xp, (0, 3, 5, 1, 2, 4))                   # (N, 2, 2, C, Ho, Wo)
    xp = xp.reshape(N, 4, C, M)

    w_mat = weight                                               # (2C, C)
    b_col = bias.reshape(C2, 1)                                  # (2C, 1)
    alpha = jnp.reshape(prelu_alpha, (1,)).astype(jnp.float32)   # (1,) SMEM scalar

    out_flat = pl.pallas_call(
        _down_kernel,
        out_shape=jax.ShapeDtypeStruct((N, C2, M), jnp.float32),
        grid=(N, num_m_tiles),
        in_specs=[
            pl.BlockSpec(memory_space=pltpu.SMEM),                        # alpha
            pl.BlockSpec((1, 4, C, TM), lambda n, m: (n, 0, 0, m)),       # xp
            pl.BlockSpec((C2, C), lambda n, m: (0, 0)),                   # weight
            pl.BlockSpec((C2, 1), lambda n, m: (0, 0)),                   # bias
        ],
        out_specs=pl.BlockSpec((1, C2, TM), lambda n, m: (n, 0, m)),
        compiler_params=pltpu.CompilerParams(
            dimension_semantics=("parallel", "parallel")),
    )(alpha, xp, w_mat, b_col)

    # ---- glue: (N, 2C, M) -> NCHW is a pure reshape (no transpose).
    return out_flat.reshape(N, C2, Ho, Wo)


def _reference(x_nchw, weight, bias, prelu_alpha):
    """Pure-JAX reference matching the PyTorch module semantics."""
    N, C, H, W = x_nchw.shape
    Ho, Wo = H // 2, W // 2
    # MaxPool2d(2)
    xp = x_nchw.reshape(N, C, Ho, 2, Wo, 2)
    pooled = jnp.max(xp, axis=(3, 5))                            # (N, C, Ho, Wo)
    # 1x1 conv
    y = jnp.einsum("nchw,oc->nohw", pooled, weight) + bias[None, :, None, None]
    # PReLU (single shared alpha)
    return jnp.where(y >= 0, y, prelu_alpha * y)


if __name__ == "__main__":
    key = jax.random.PRNGKey(0)
    N, C, H, W = 2, 4, 16, 16
    k_x, k_w, k_b = jax.random.split(key, 3)

    x = jax.random.normal(k_x, (N, C, H, W), dtype=jnp.float32)
    # Deterministic synthetic parameters (conv kernel is 1x1 -> store as (2C, C)).
    weight = jax.random.normal(k_w, (2 * C, C), dtype=jnp.float32) * 0.1
    bias = jax.random.normal(k_b, (2 * C,), dtype=jnp.float32) * 0.1
    prelu_alpha = jnp.float32(0.25)   # nn.PReLU() default init

    out = down_forward(x, weight, bias, prelu_alpha)
    out = jax.block_until_ready(out)

    ref = _reference(x, weight, bias, prelu_alpha)
    assert out.shape == (N, 2 * C, H // 2, W // 2), out.shape
    assert jnp.allclose(out, ref, rtol=1e-5, atol=1e-5), "mismatch vs reference"

    print("KERNEL_OK")
</pallas_src>

<mosaic_0001>
module attributes {stable_mosaic.version = 11 : i64} {
  func.func @_down_kernel(%arg0: i32, %arg1: i32, %arg2: memref<1xf32, #tpu.memory_space<smem>>, %arg3: memref<1x4x4x64xf32, #tpu.memory_space<vmem>>, %arg4: memref<8x4xf32, #tpu.memory_space<vmem>>, %arg5: memref<8x1xf32, #tpu.memory_space<vmem>>, %arg6: memref<1x8x64xf32, #tpu.memory_space<vmem>>) attributes {dimension_semantics = [#tpu.dimension_semantics<parallel>, #tpu.dimension_semantics<parallel>], iteration_bounds = array<i64: 2, 1>, scalar_prefetch = 0 : i64, scratch_operands = 0 : i64, tpu.core_type = #tpu.core_type<tc>, window_params = [{transform_indices = @transform_0, window_bounds = array<i64: 1>}, {transform_indices = @transform_1, window_bounds = array<i64: 1, 4, 4, 64>}, {pipeline_mode = #tpu.pipeline_mode<synchronous>, transform_indices = @transform_2, window_bounds = array<i64: 8, 4>}, {pipeline_mode = #tpu.pipeline_mode<synchronous>, transform_indices = @transform_3, window_bounds = array<i64: 8, 1>}, {transform_indices = @transform_4, window_bounds = array<i64: 1, 8, 64>}]} {
    %c0 = arith.constant 0 : index
    %c0_0 = arith.constant 0 : index
    %c0_1 = arith.constant 0 : index
    %c0_2 = arith.constant 0 : index
    %0 = vector.load %arg3[%c0, %c0_0, %c0_1, %c0_2] : memref<1x4x4x64xf32, #tpu.memory_space<vmem>>, vector<1x1x4x64xf32>
    %1 = vector.shape_cast %0 : vector<1x1x4x64xf32> to vector<4x64xf32>
    %c0_3 = arith.constant 0 : index
    %c1 = arith.constant 1 : index
    %c0_4 = arith.constant 0 : index
    %c0_5 = arith.constant 0 : index
    %2 = vector.load %arg3[%c0_3, %c1, %c0_4, %c0_5] : memref<1x4x4x64xf32, #tpu.memory_space<vmem>>, vector<1x1x4x64xf32>
    %3 = vector.shape_cast %2 : vector<1x1x4x64xf32> to vector<4x64xf32>
    %c0_6 = arith.constant 0 : index
    %c2 = arith.constant 2 : index
    %c0_7 = arith.constant 0 : index
    %c0_8 = arith.constant 0 : index
    %4 = vector.load %arg3[%c0_6, %c2, %c0_7, %c0_8] : memref<1x4x4x64xf32, #tpu.memory_space<vmem>>, vector<1x1x4x64xf32>
    %5 = vector.shape_cast %4 : vector<1x1x4x64xf32> to vector<4x64xf32>
    %c0_9 = arith.constant 0 : index
    %c3 = arith.constant 3 : index
    %c0_10 = arith.constant 0 : index
    %c0_11 = arith.constant 0 : index
    %6 = vector.load %arg3[%c0_9, %c3, %c0_10, %c0_11] : memref<1x4x4x64xf32, #tpu.memory_space<vmem>>, vector<1x1x4x64xf32>
    %7 = vector.shape_cast %6 : vector<1x1x4x64xf32> to vector<4x64xf32>
    %8 = arith.maximumf %1, %3 : vector<4x64xf32>
    %9 = arith.maximumf %5, %7 : vector<4x64xf32>
    %10 = arith.maximumf %8, %9 : vector<4x64xf32>
    %c0_12 = arith.constant 0 : index
    %c0_13 = arith.constant 0 : index
    %11 = vector.load %arg4[%c0_12, %c0_13] : memref<8x4xf32, #tpu.memory_space<vmem>>, vector<8x4xf32>
    %cst = arith.constant dense<0.000000e+00> : vector<8x64xf32>
    %12 = tpu.matmul %11, %10, %cst {dimension_numbers = #tpu.dot_dimension_numbers<[1], [0], [0], [1], [0, 0, 1, 1], [], []>} : vector<8x4xf32>, vector<4x64xf32>, vector<8x64xf32> -> vector<8x64xf32>
    %c0_14 = arith.constant 0 : index
    %c0_15 = arith.constant 0 : index
    %13 = vector.load %arg5[%c0_14, %c0_15] : memref<8x1xf32, #tpu.memory_space<vmem>>, vector<8x1xf32>
    %14 = vector.broadcast %13 : vector<8x1xf32> to vector<8x64xf32>
    %15 = arith.addf %12, %14 : vector<8x64xf32>
    %c0_16 = arith.constant 0 : index
    %16 = memref.load %arg2[%c0_16] : memref<1xf32, #tpu.memory_space<smem>>
    %cst_17 = arith.constant 0.000000e+00 : f32
    %17 = vector.broadcast %cst_17 : f32 to vector<8x64xf32>
    %18 = arith.cmpf oge, %15, %17 : vector<8x64xf32>
    %19 = vector.broadcast %16 : f32 to vector<8x64xf32>
    %20 = arith.mulf %19, %15 : vector<8x64xf32>
    %21 = arith.select %18, %15, %20 : vector<8x64xi1>, vector<8x64xf32>
    %c0_18 = arith.constant 0 : index
    %c0_19 = arith.constant 0 : index
    %c0_20 = arith.constant 0 : index
    %22 = vector.load %arg6[%c0_18, %c0_19, %c0_20] : memref<1x8x64xf32, #tpu.memory_space<vmem>>, vector<1x8x64xf32>
    %23 = vector.shape_cast %22 : vector<1x8x64xf32> to vector<8x64xf32>
    %24 = vector.shape_cast %21 : vector<8x64xf32> to vector<1x8x64xf32>
    tpu.vector_store %arg6[%c0_18, %c0_19, %c0_20], %24 {strides = array<i32>} : memref<1x8x64xf32, #tpu.memory_space<vmem>>, vector<1x8x64xf32>,
    return
  }
  func.func @transform_0(%arg0: i32, %arg1: i32) -> i32 {
    %c0_i32 = arith.constant 0 : i32
    %c0_i32_0 = arith.constant 0 : i32
    return %c0_i32 : i32
  }
  func.func @transform_1(%arg0: i32, %arg1: i32) -> (i32, i32, i32, i32) {
    %c0_i32 = arith.constant 0 : i32
    %c0_i32_0 = arith.constant 0 : i32
    %c0_i32_1 = arith.constant 0 : i32
    return %arg0, %c0_i32, %c0_i32_0, %arg1 : i32, i32, i32, i32
  }
  func.func @transform_2(%arg0: i32, %arg1: i32) -> (i32, i32) {
    %c0_i32 = arith.constant 0 : i32
    %c0_i32_0 = arith.constant 0 : i32
    %c0_i32_1 = arith.constant 0 : i32
    return %c0_i32, %c0_i32_0 : i32, i32
  }
  func.func @transform_3(%arg0: i32, %arg1: i32) -> (i32, i32) {
    %c0_i32 = arith.constant 0 : i32
    %c0_i32_0 = arith.constant 0 : i32
    %c0_i32_1 = arith.constant 0 : i32
    return %c0_i32, %c0_i32_0 : i32, i32
  }
  func.func @transform_4(%arg0: i32, %arg1: i32) -> (i32, i32, i32) {
    %c0_i32 = arith.constant 0 : i32
    %c0_i32_0 = arith.constant 0 : i32
    return %arg0, %c0_i32, %arg1 : i32, i32, i32
  }
}

</mosaic_0001>

<llo_original>
// kernel: tpu_custom_call.1
$region0: #{tpu_custom_call.1}
  #allocation0 [shape = 'u32[]', space=smem, size = 0x4, offset = 0x4, fixed_abs, tag = 'smem constant byte address 0x4 - core index']
  #allocation1 [shape = 'u32[144,128]{1,0:T(1,128)}', space=vmem, size = 0x12000, scoped, tag = 'internal scratch']
  #allocation2 [shape = 'f32[1]{0:T(128)S(6)}', space=smem, size = 0x200, scoped, tag = 'scoped memory for tpu_custom_call.1']
  %s0 = inlined_call_operand.<no memory space> [shape: f32[1], index: 0, kind: input, shape index: {}]
  %s1 = inlined_call_operand.hbm [shape: f32[2,4,4,64], index: 1, kind: input, shape index: {}]
  %s2 = inlined_call_operand.vmem [shape: f32[8,4], index: 2, kind: input, shape index: {}]
  %s3 = inlined_call_operand.vmem [shape: f32[8,1], index: 3, kind: input, shape index: {}]
  %s4 = inlined_call_operand.hbm [shape: f32[2,8,64], index: 4, kind: output, shape index: {}]
  %s5 = sld [smem:[#allocation0]]
  $region53: #{tpu_custom_call.1} parent=0
    _
  %s7 = ssub.s32 1, %s5
  %s8 = scalar_select 0, %s7, %s5
  %9 = sst [smem:[#allocation2]] %s0
  $region1: #{tpu_custom_call.1} parent=0
    #allocation3 [shape = 'u8[16384]{0}', space=vmem, size = 0x4000, scoped, tag = 'input window, operand 1']
    #allocation4 [shape = 's32[2]{0}', space=sflag, size = 0x8, scoped, tag = 'scoped memory for tpu_custom_call.1']
    #allocation5 [shape = 's32[2]{0}', space=sflag, size = 0x8, scoped, tag = 'scoped memory for tpu_custom_call.1']
    #allocation6 [shape = 'u8[8192]{0}', space=vmem, size = 0x2000, scoped, tag = 'output window, operand 0']
    %10 = vsyncpa [#allocation4], 0
    %s11 = scalar_lea.sflag [#allocation4], 1
    %12 = vsyncpa %s11, 0
    %13 = vsyncpa [#allocation5], 0
    %s14 = scalar_lea.sflag [#allocation5], 1
    %15 = vsyncpa %s14, 0
    loop: start=0, step=1, limit=4
    $region2: #{tpu_custom_call.1} parent=1 // loop_pre_header
      _
    $region3: #{tpu_custom_call.1} parent=1 // loop_header
      %s17 = sphi 0, %s21
      %p18 = scmp.ge.s32.totalorder %s17, 4
      %s24 = sphi 0, %s36
      %s25 = sphi 0, %s32
      %s26 = sphi 0, %s24
      %s27 = sphi 0, %s25
      %s28 = sphi 0, %s26
      %s29 = sphi 0, %s27
      %s37 = sphi 0, %s37
      %s39 = sphi 0, %s37
      %s40 = sphi 0, %s39
      %s54 = sphi 0, %s40
      %s62 = sphi 0, %s64
      %s65 = sphi 0, %s62
      %s66 = sphi 0, %s65
      %s82 = sphi 0, %s66
      %s86 = sphi 0, %s86
      %s88 = sphi 0, %s86
      %s89 = sphi 0, %s88
      %s103 = sphi 0, %s89
      %s107 = sphi 0, %s107
      %s109 = sphi 0, %s107
      %s110 = sphi 0, %s109
      %s124 = sphi 0, %s110
      %s132 = sphi 0, %s134
      %s135 = sphi 0, %s132
      %s136 = sphi 0, %s135
      %s152 = sphi 0, %s136
    $region4: #{tpu_custom_call.1} parent=1 // loop_header_branch
      %20 = sbr.rel (%p18) target = $region8
    $region5: #{tpu_custom_call.1} parent=1 // loop_body
      %s22 = ssub.s32 %s17, 1
      %s23 = ssub.s32 %s17, 2
      %s30 = sadd.s32 1, %s25
      %p31 = scmp.ge.s32.totalorder %s30, 1
      %s32 = scalar_select %p31, 0, %s30
      %s33 = sadd.s32 1, %s24
      %s34 = scalar_select %p31, %s33, %s24
      %p35 = scmp.ge.s32.totalorder %s34, 2
      %s36 = scalar_select %p35, 0, %s34
      %s38 = sadd.s32 %s37, 1
      %p41 = scmp.eq.s32.totalorder %s17, 1
      %p42 = scmp.ne.s32.totalorder %s37, %s39
      %p43 = scmp.eq.s32.totalorder %s17, 0
      %p44 = por %p42, %p43
      %p45 = scmp.ne.s32.totalorder %s37, %s39
      %p46 = scmp.eq.s32.totalorder %s22, 1
      %p47 = por %p45, %p46
      %p48 = scmp.ne.s32.totalorder %s39, %s40
      %p49 = scmp.eq.s32.totalorder %s22, 0
      %p50 = por %p48, %p49
      %p51 = scmp.ne.s32.totalorder %s39, %s40
      %p52 = scmp.eq.s32.totalorder %s23, 1
      %p53 = por %p51, %p52
      %p55 = scmp.ne.s32.totalorder %s40, %s54
      %p56 = scmp.eq.s32.totalorder %s23, 0
      %p57 = por %p55, %p56
      %s58 = ssub.s32 %s24, %s36
      %s59 = ssub.s32 %s25, %s32
      %s60 = sor.u32 %s58, %s59
      %p61 = scmp.eq.s32.totalorder %s60, 0
      %s63 = sadd.s32 %s62, 1
      %s64 = scalar_select %p61, %s62, %s63
      %p67 = pneg %p61
      %p68 = scmp.eq.s32.totalorder %s17, 1
      %p69 = por %p67, %p68
      %p70 = scmp.ne.s32.totalorder %s62, %s65
      %p71 = scmp.eq.s32.totalorder %s17, 0
      %p72 = por %p70, %p71
      %p73 = scmp.ne.s32.totalorder %s62, %s65
      %p74 = scmp.eq.s32.totalorder %s22, 1
      %p75 = por %p73, %p74
      %p76 = scmp.ne.s32.totalorder %s65, %s66
      %p77 = scmp.eq.s32.totalorder %s22, 0
      %p78 = por %p76, %p77
      %p79 = scmp.ne.s32.totalorder %s65, %s66
      %p80 = scmp.eq.s32.totalorder %s23, 1
      %p81 = por %p79, %p80
      %p83 = scmp.ne.s32.totalorder %s66, %s82
      %p84 = scmp.eq.s32.totalorder %s23, 0
      %p85 = por %p83, %p84
      %s87 = sadd.s32 %s86, 1
      %p90 = scmp.eq.s32.totalorder %s17, 1
      %p91 = scmp.ne.s32.totalorder %s86, %s88
      %p92 = scmp.eq.s32.totalorder %s17, 0
      %p93 = por %p91, %p92
      %p94 = scmp.ne.s32.totalorder %s86, %s88
      %p95 = scmp.eq.s32.totalorder %s22, 1
      %p96 = por %p94, %p95
      %p97 = scmp.ne.s32.totalorder %s88, %s89
      %p98 = scmp.eq.s32.totalorder %s22, 0
      %p99 = por %p97, %p98
      %p100 = scmp.ne.s32.totalorder %s88, %s89
      %p101 = scmp.eq.s32.totalorder %s23, 1
      %p102 = por %p100, %p101
      %p104 = scmp.ne.s32.totalorder %s89, %s103
      %p105 = scmp.eq.s32.totalorder %s23, 0
      %p106 = por %p104, %p105
      %s108 = sadd.s32 %s107, 1
      %p111 = scmp.eq.s32.totalorder %s17, 1
      %p112 = scmp.ne.s32.totalorder %s107, %s109
      %p113 = scmp.eq.s32.totalorder %s17, 0
      %p114 = por %p112, %p113
      %p115 = scmp.ne.s32.totalorder %s107, %s109
      %p116 = scmp.eq.s32.totalorder %s22, 1
      %p117 = por %p115, %p116
      %p118 = scmp.ne.s32.totalorder %s109, %s110
      %p119 = scmp.eq.s32.totalorder %s22, 0
      %p120 = por %p118, %p119
      %p121 = scmp.ne.s32.totalorder %s109, %s110
      %p122 = scmp.eq.s32.totalorder %s23, 1
      %p123 = por %p121, %p122
      %p125 = scmp.ne.s32.totalorder %s110, %s124
      %p126 = scmp.eq.s32.totalorder %s23, 0
      %p127 = por %p125, %p126
      %s128 = ssub.s32 %s24, %s36
      %s129 = ssub.s32 %s25, %s32
      %s130 = sor.u32 %s128, %s129
      %p131 = scmp.eq.s32.totalorder %s130, 0
      %s133 = sadd.s32 %s132, 1
      %s134 = scalar_select %p131, %s132, %s133
      %p137 = pneg %p131
      %p138 = scmp.eq.s32.totalorder %s17, 1
      %p139 = por %p137, %p138
      %p140 = scmp.ne.s32.totalorder %s132, %s135
      %p141 = scmp.eq.s32.totalorder %s17, 0
      %p142 = por %p140, %p141
      %p143 = scmp.ne.s32.totalorder %s132, %s135
      %p144 = scmp.eq.s32.totalorder %s22, 1
      %p145 = por %p143, %p144
      %p146 = scmp.ne.s32.totalorder %s135, %s136
      %p147 = scmp.eq.s32.totalorder %s22, 0
      %p148 = por %p146, %p147
      %p149 = scmp.ne.s32.totalorder %s135, %s136
      %p150 = scmp.eq.s32.totalorder %s23, 1
      %p151 = por %p149, %p150
      %p153 = scmp.ne.s32.totalorder %s136, %s152
      %p154 = scmp.eq.s32.totalorder %s23, 0
      %p155 = por %p153, %p154
      %p156 = scmp.le.s32.totalorder 1, %s17
      %p157 = scmp.lt.s32.totalorder %s17, 3
      %p158 = pnand %p156, %p157
      %p159 = pneg %p158
      // Predicated region
      $region9: #{tpu_custom_call.1} parent=5 // pred_check
        _
      $region10: #{tpu_custom_call.1} parent=5 // pred_check_branch
        %161 = sbr.rel (%p158) target = $region12
      $region11: #{tpu_custom_call.1} parent=5 // pred_region
        %s162 = ssub.s32 %s17, 1
        // Predicated region
        $region13: #{tpu_custom_call.1} parent=11 // pred_check
          %p163 = pneg %p50
        $region14: #{tpu_custom_call.1} parent=11 // pred_check_branch
          %165 = sbr.rel (%p163) target = $region16
        $region15: #{tpu_custom_call.1} parent=11 // pred_region
          _
        $region16: #{tpu_custom_call.1} parent=11 // pred_fallthru
          _
        // Predicated region
        $region17: #{tpu_custom_call.1} parent=11 // pred_check
          %p166 = pneg %p99
        $region18: #{tpu_custom_call.1} parent=11 // pred_check_branch
          %168 = sbr.rel (%p166) target = $region20
        $region19: #{tpu_custom_call.1} parent=11 // pred_region
          _
        $region20: #{tpu_custom_call.1} parent=11 // pred_fallthru
          _
        // Predicated region
        $region21: #{tpu_custom_call.1} parent=11 // pred_check
          %p169 = pneg %p120
        $region22: #{tpu_custom_call.1} parent=11 // pred_check_branch
          %171 = sbr.rel (%p169) target = $region24
        $region23: #{tpu_custom_call.1} parent=11 // pred_region
          _
        $region24: #{tpu_custom_call.1} parent=11 // pred_fallthru
          _
      $region12: #{tpu_custom_call.1} parent=5 // pred_fallthru
        _
      %p172 = scmp.lt.s32.totalorder %s17, 2
      // Predicated region
      $region25: #{tpu_custom_call.1} parent=5 // pred_check
        %p173 = pneg %p172
      $region26: #{tpu_custom_call.1} parent=5 // pred_check_branch
        %175 = sbr.rel (%p173) target = $region28
      $region27: #{tpu_custom_call.1} parent=5 // pred_region
        // Predicated region
        $region29: #{tpu_custom_call.1} parent=27 // pred_check
          %p176 = pneg %p72
        $region30: #{tpu_custom_call.1} parent=27 // pred_check_branch
          %178 = sbr.rel (%p176) target = $region32
        $region31: #{tpu_custom_call.1} parent=27 // pred_region
          %s179 = sand.u32 %s62, 1
          %s180 = scalar_lea.sflag [#allocation4], %s179
          %s181 = sand.u32 %s62, 1
          %s182 = smul.addr %s181, 16
          %s183 = scalar_lea.vmem [#allocation3], %s182
          %s185 = ssub.s32 256, 256
          %186 = vsyncadd %s180, %s185
          %s187 = smul.addr %s24, 4
          %s188 = sadd.s32 %s25, %s187
          %s189 = smul.addr %s188, 64
          %s190 = scalar_lea.hbm %s1, %s189
          %s191 = sshll.u32 %s183, 4
          %s192 = int_to_ptr.vmem [resolvable:$true] %s191
          %197 = dma.hbm_to_vmem [thread:$0]  %s190, 256, %s192, %s180, 64, 64, 4
        $region32: #{tpu_custom_call.1} parent=27 // pred_fallthru
          _
      $region28: #{tpu_custom_call.1} parent=5 // pred_fallthru
        _
      %p198 = scmp.le.s32.totalorder 1, %s17
      %p199 = scmp.lt.s32.totalorder %s17, 3
      %p200 = pnand %p198, %p199
      %p201 = pneg %p200
      // Predicated region
      $region33: #{tpu_custom_call.1} parent=5 // pred_check
        _
      $region34: #{tpu_custom_call.1} parent=5 // pred_check_branch
        %203 = sbr.rel (%p200) target = $region36
      $region35: #{tpu_custom_call.1} parent=5 // pred_region
        %s204 = ssub.s32 %s17, 1
        %s205 = sand.u32 %s65, 1
        %s206 = scalar_lea.sflag [#allocation4], %s205
        %s207 = sand.u32 %s65, 1
        %s208 = smul.addr %s207, 16
        %s209 = scalar_lea.vmem [#allocation3], %s208
        // Predicated region
        $region37: #{tpu_custom_call.1} parent=35 // pred_check
          %p210 = pneg %p78
        $region38: #{tpu_custom_call.1} parent=35 // pred_check_branch
          %212 = sbr.rel (%p210) target = $region40
        $region39: #{tpu_custom_call.1} parent=35 // pred_region
          %213 = dma.done %s206, 256
        $region40: #{tpu_custom_call.1} parent=35 // pred_fallthru
          _
        %p214 = pneg %p50
        %p215 = pneg %p47
        %s216 = sand.u32 %s65, 1
        %s217 = scalar_lea.sflag [#allocation4], %s216
        %s218 = sand.u32 %s65, 1
        %s219 = smul.addr %s218, 16
        %s220 = scalar_lea.vmem [#allocation3], %s219
        %p221 = pneg %p78
        %p222 = pneg %p75
        %p223 = pneg %p99
        %p224 = pneg %p96
        %p225 = pneg %p120
        %p226 = pneg %p117
        %p227 = pneg %p148
        %p228 = pneg %p145
        %s229 = sand.u32 %s135, 1
        %s230 = scalar_lea.sflag [#allocation5], %s229
        %s231 = sand.u32 %s135, 1
        %s232 = smul.addr %s231, 8
        %s233 = scalar_lea.vmem [#allocation6], %s232
        %v234 = vld [vmem:[%s209] sm:$0xf]
        %s235 = scalar_lea.vmem %s209, 4 [#allocation3]
        %v236 = vld [vmem:[%s235] sm:$0xf]
        %s237 = scalar_lea.vmem %s209, 8 [#allocation3]
        %v238 = vld [vmem:[%s237] sm:$0xf]
        %s239 = scalar_lea.vmem %s209, 12 [#allocation3]
        %v240 = vld [vmem:[%s239] sm:$0xf]
        %v241 = vmax.f32 %v234, %v236
        %v242 = vmax.f32 %v238, %v240
        %v243 = vmax.f32 %v241, %v242
        %v244 = vld [vmem:[%s2] sm:$0xff]
        %v245 = vld [vmem:[%s3] sm:$0xff]
        %247 = vset.pattern.permute.xlu0 0
        %248 = vperm.xlu0 %247, %v245
        %v249 = vpop.permute.xlu0 %248
        %vm251 = vcmask 31744
        %v253 = vsel %vm251, %v244, 0
        %vm255 = vcmask 1043456
        %v257 = vsel %vm255, %v243, 0
        %259 = vmatprep.subr.mxu0 0.0
        %260 = vmatpush1.msra.mxu0 0.0
        %261 = vmatprep.subr.mxu0 0.0
        %262 = vmatpush1.msra.mxu0 0.0
        %263 = vmatprep.subr.mxu0 0.0
        %264 = vmatpush1.msra.mxu0 0.0
        %265 = vmatprep.subr.mxu0 0.0
        %266 = vmatpush1.msra.mxu0 0.0
        %267 = vmatprep.subr.mxu0 0.0
        %268 = vmatpush1.msra.mxu0 0.0
        %269 = vmatprep.subr.mxu0 0.0
        %270 = vmatpush1.msra.mxu0 0.0
        %271 = vmatprep.subr.mxu0 0.0
        %272 = vmatpush1.msra.mxu0 0.0
        %273 = vmatprep.subr.mxu0 0.0
        %274 = vmatpush1.msra.mxu0 0.0
        %275 = vmatprep.subr.mxu0 0.0
        %276 = vmatpush1.msra.mxu0 0.0
        %277 = vmatprep.subr.mxu0 0.0
        %278 = vmatpush1.msra.mxu0 0.0
        %279 = vmatprep.subr.mxu0 0.0
        %280 = vmatpush1.msra.mxu0 0.0
        %281 = vmatprep.subr.mxu0 0.0
        %282 = vmatpush1.msra.mxu0 0.0
        %283 = vmatprep.subr.mxu0 0.0
        %284 = vmatpush1.msra.mxu0 0.0
        %285 = vmatprep.subr.mxu0 0.0
        %286 = vmatpush1.msra.mxu0 0.0
        %287 = vmatprep.subr.mxu0 0.0
        %288 = vmatpush1.msra.mxu0 0.0
        %289 = vmatprep.subr.mxu0 0.0
        %290 = vmatpush1.msra.mxu0 %v257
        %291 = vmatprep.subr.mxu0 0.0
        %292 = vmatpush2.msra.mxu0 0.0
        %293 = vmatprep.subr.mxu0 0.0
        %294 = vmatpush2.msra.mxu0 0.0
        %295 = vmatprep.subr.mxu0 0.0
        %296 = vmatpush2.msra.mxu0 0.0
        %297 = vmatprep.subr.mxu0 0.0
        %298 = vmatpush2.msra.mxu0 0.0
        %299 = vmatprep.subr.mxu0 0.0
        %300 = vmatpush2.msra.mxu0 0.0
        %301 = vmatprep.subr.mxu0 0.0
        %302 = vmatpush2.msra.mxu0 0.0
        %303 = vmatprep.subr.mxu0 0.0
        %304 = vmatpush2.msra.mxu0 0.0
        %305 = vmatprep.subr.mxu0 0.0
        %306 = vmatpush2.msra.mxu0 0.0
        %307 = vmatprep.subr.mxu0 0.0
        %308 = vmatpush2.msra.mxu0 0.0
        %309 = vmatprep.subr.mxu0 0.0
        %310 = vmatpush2.msra.mxu0 0.0
        %311 = vmatprep.subr.mxu0 0.0
        %312 = vmatpush2.msra.mxu0 0.0
        %313 = vmatprep.subr.mxu0 0.0
        %314 = vmatpush2.msra.mxu0 0.0
        %315 = vmatprep.subr.mxu0 0.0
        %316 = vmatpush2.msra.mxu0 0.0
        %317 = vmatprep.subr.mxu0 0.0
        %318 = vmatpush2.msra.mxu0 0.0
        %319 = vmatprep.subr.mxu0 0.0
        %320 = vmatpush2.msra.mxu0 0.0
        %321 = vmatprep.subr.mxu0 0.0
        %322 = vmatpush2.msra.mxu0 0.0
        %323 = vmatprep.mubr.f32.mxu0 0.0
        %324 = vmatmul.mubr.f32.gmra.mxu0 %v253
        %v325 = vpop.f32.mrf.mxu0
        %v326 = vadd.f32 %v249, %v325
        %v327 = vpop.f32.mrf.mxu0
        %328 = vdwg.mxu0
        %s329 = sld [smem:[#allocation2]]
        %vm330 = vcmp.ge.f32.partialorder %v326, 0.0
        %v331 = vstv %s329
        %v332 = vmul.f32 %v331, %v326
        %v333 = vsel %vm330, %v326, %v332
        %vm334 = vcmask 523264
        %335 = vst.msk [vmem:[%s233] sm:$0xff] %vm334, %v333
        %s336 = sand.u32 %s135, 1
        %s337 = scalar_lea.sflag [#allocation5], %s336
        %s338 = sand.u32 %s135, 1
        %s339 = smul.addr %s338, 8
        %s340 = scalar_lea.vmem [#allocation6], %s339
        // Predicated region
        $region41: #{tpu_custom_call.1} parent=35 // pred_check
          %p341 = pneg %p145
        $region42: #{tpu_custom_call.1} parent=35 // pred_check_branch
          %343 = sbr.rel (%p341) target = $region44
        $region43: #{tpu_custom_call.1} parent=35 // pred_region
          %s345 = ssub.s32 128, 128
          %346 = vsyncadd %s337, %s345
          %s347 = sadd.s32 %s27, %s26
          %s348 = smul.addr %s347, 128
          %s349 = scalar_lea.hbm %s4, %s348
          %s351 = sshll.u32 %s340, 4
          %s352 = int_to_ptr.vmem [resolvable:$true] %s351
          %354 = dma.vmem_to_hbm [thread:$0]  %s352, 128, %s349, %s337
        $region44: #{tpu_custom_call.1} parent=35 // pred_fallthru
          _
      $region36: #{tpu_custom_call.1} parent=5 // pred_fallthru
        _
      %p355 = scmp.le.s32.totalorder 2, %s17
      // Predicated region
      $region45: #{tpu_custom_call.1} parent=5 // pred_check
        %p356 = pneg %p355
      $region46: #{tpu_custom_call.1} parent=5 // pred_check_branch
        %358 = sbr.rel (%p356) target = $region48
      $region47: #{tpu_custom_call.1} parent=5 // pred_region
        %s359 = ssub.s32 %s17, 2
        // Predicated region
        $region49: #{tpu_custom_call.1} parent=47 // pred_check
          %p360 = pneg %p151
        $region50: #{tpu_custom_call.1} parent=47 // pred_check_branch
          %362 = sbr.rel (%p360) target = $region52
        $region51: #{tpu_custom_call.1} parent=47 // pred_region
          %s363 = sand.u32 %s136, 1
          %s364 = scalar_lea.sflag [#allocation5], %s363
          %s365 = sand.u32 %s136, 1
          %s366 = smul.addr %s365, 8
          %s367 = scalar_lea.vmem [#allocation6], %s366
          %368 = dma.done %s364, 128
        $region52: #{tpu_custom_call.1} parent=47 // pred_fallthru
          _
      $region48: #{tpu_custom_call.1} parent=5 // pred_fallthru
        _
    $region6: #{tpu_custom_call.1} parent=1 // loop_footer
      %s21 = sadd.s32 1, %s17
    $region7: #{tpu_custom_call.1} parent=1 // loop_footer_branch
      %16 = sbr.rel target = $region3
    $region8: #{tpu_custom_call.1} parent=1 // loop_exit
      _
    %369 = vsyncpa [#allocation4], 1
    %s370 = scalar_lea.sflag [#allocation4], 1
    %371 = vsyncpa %s370, 1
    %372 = vsyncpa [#allocation5], 1
    %s373 = scalar_lea.sflag [#allocation5], 1
    %374 = vsyncpa %s373, 1

</llo_original>
